<compile_context>
chip_gen: v7x
topology: tpu7x:2x2x1
jax: 0.10.0
libtpu: 0.0.40
codegen_flags: <defaults>
</compile_context>

<pallas_src>
import math

import jax
import jax.numpy as jnp
from jax.experimental import pallas as pl
from jax.experimental.pallas import tpu as pltpu


# Below this size a materializing copy is dominated by pallas_call launch and
# per-step overhead; fall back to the metadata-only reshape even if asked.
_MIN_MATERIALIZE_BYTES = 4 * 1024 * 1024


def _dma_flatten_kernel(x_hbm, o_hbm, sem):
    # Single whole-buffer HBM->HBM copy: no VMEM round-trip, no vreg traffic.
    cp = pltpu.make_async_copy(x_hbm, o_hbm, sem)
    cp.start()
    cp.wait()


def flatten_pallas(x: jax.Array, materialize: bool = False) -> jax.Array:
    """Equivalent of PyTorch Flatten.forward: x.view(-1, prod(x.shape[1:])).

    materialize=False (default): metadata-only reshape (zero HBM traffic).
    materialize=True: additionally produce a fresh contiguous buffer via one
    HBM->HBM DMA, but only when the tensor is large enough that the copy is
    not pure launch overhead.
    """
    b = x.shape[0] if x.ndim >= 1 else 1
    d = math.prod(x.shape[1:]) if x.ndim > 1 else 1
    total = b * d
    itemsize = jnp.dtype(x.dtype).itemsize

    # Primary path: pure metadata, identical element order to torch .view on a
    # contiguous tensor.
    if (not materialize) or total == 0 or total * itemsize < _MIN_MATERIALIZE_BYTES:
        return jnp.reshape(x, (b, d))

    # Materialize path: one whole-buffer HBM->HBM DMA. The input reshape below
    # is itself metadata-only (bitcast view of the contiguous buffer).
    x_flat = jnp.reshape(x, (b, d))

    out = pl.pallas_call(
        _dma_flatten_kernel,
        out_shape=jax.ShapeDtypeStruct((b, d), x.dtype),
        in_specs=[pl.BlockSpec(memory_space=pl.ANY)],
        out_specs=pl.BlockSpec(memory_space=pl.ANY),
        scratch_shapes=[pltpu.SemaphoreType.DMA(())],
        cost_estimate=pl.CostEstimate(
            flops=0,
            transcendentals=0,
            bytes_accessed=2 * total * itemsize,
        ),
    )(x_flat)

    return out


if __name__ == "__main__":
    key = jax.random.PRNGKey(0)
    k_small, k_big = jax.random.split(key)

    # 1) Default path: small NCHW conv feature map (B, C, H, W). Flatten is a
    #    zero-cost metadata reshape here — no kernel launched.
    x = jax.random.normal(k_small, (2, 4, 16, 16), dtype=jnp.float32)
    y = jax.block_until_ready(flatten_pallas(x))
    y_ref = jnp.reshape(x, (x.shape[0], -1))
    assert y.shape == (2, 4 * 16 * 16), y.shape
    assert y.dtype == x.dtype
    assert bool(jnp.array_equal(y, y_ref))

    # 2) Materialize path: 4 MiB tensor clears the copy threshold and exercises
    #    the single HBM->HBM DMA Pallas kernel.
    x_big = jax.random.normal(k_big, (16, 64, 32, 32), dtype=jnp.float32)
    y_big = jax.block_until_ready(flatten_pallas(x_big, materialize=True))
    y_big_ref = jnp.reshape(x_big, (x_big.shape[0], -1))
    assert y_big.shape == (16, 64 * 32 * 32), y_big.shape
    assert y_big.dtype == x_big.dtype
    assert bool(jnp.array_equal(y_big, y_big_ref))

    print("KERNEL_OK")
</pallas_src>

<mosaic_0001>
module attributes {stable_mosaic.version = 11 : i64} {
  func.func @_dma_flatten_kernel(%arg0: memref<16x65536xf32, #tpu.memory_space<any>>, %arg1: memref<16x65536xf32, #tpu.memory_space<any>>, %arg2: memref<!tpu.dma_semaphore, #tpu.memory_space<semaphore_mem>>) attributes {dimension_semantics = [], scalar_prefetch = 0 : i64, scratch_operands = 1 : i64, tpu.core_type = #tpu.core_type<tc>} {
    tpu.enqueue_dma source(%arg0 : memref<16x65536xf32, #tpu.memory_space<any>>) target(%arg1 : memref<16x65536xf32, #tpu.memory_space<any>>) target_semaphore(%arg2 : memref<!tpu.dma_semaphore, #tpu.memory_space<semaphore_mem>>)
    tpu.wait_dma2 semaphore(%arg2 : memref<!tpu.dma_semaphore, #tpu.memory_space<semaphore_mem>>) src(%arg0 : memref<16x65536xf32, #tpu.memory_space<any>>) dst(%arg1 : memref<16x65536xf32, #tpu.memory_space<any>>)
    return
  }
}

</mosaic_0001>

<llo_original>
// kernel: tpu_custom_call.1
$region0: #{tpu_custom_call.1}
  #allocation0 [shape = 'u32[]', space=smem, size = 0x4, offset = 0x4, fixed_abs, tag = 'smem constant byte address 0x4 - core index']
  #allocation1 [shape = 'u32[144,128]{1,0:T(1,128)}', space=vmem, size = 0x12000, scoped, tag = 'internal scratch']
  #allocation2 [shape = 's32[1]{0}', space=sflag, size = 0x4, scoped, tag = 'scratch operand']
  #allocation3 [shape = 's32[]', space=sflag, size = 0x4, offset = 0, fixed_abs, tag = 'sflag constant byte address 0x0 - dummy sync flag']
  #allocation4 [shape = 'u32[0]{0}', space=smem, size = 0, offset = 0, fixed_abs, tag = 'smem constant byte address 0x0 - null']
  %s0 = inlined_call_operand.hbm [shape: f32[16,65536], index: 0, kind: input, shape index: {}]
  %s1 = inlined_call_operand.hbm [shape: f32[16,65536], index: 1, kind: output, shape index: {}]
  %s2 = sld [smem:[#allocation0]]
  $region2: #{tpu_custom_call.1} parent=0
    _
  %s4 = ssub.s32 1, %s2
  %s5 = scalar_select 0, %s4, %s2
  %s7 = sshll.u32 1, 14
  %s8 = sxor.u32 4294967295, %s7
  %s11 = sshll.u32 3, 24
  %s12 = sxor.u32 4294967295, %s11
  %s13 = sand.u32 0, %s12
  %s15 = sor.u32 %s13, 0
  %18 = dma.general %s0, 131072, %s1, [#allocation2], [#allocation3], [#allocation4], %s15, 0
  %s19 = smul.u32 8, 2
  %s20 = smul.u32 %s19, 512
  %s21 = sshll.u32 %s20, 4
  %22 = dma.done [#allocation2], %s21
  %23 = vsyncmov [#allocation2]
  %s24 = vpop.sfrf %23
  %p25 = scmp.eq.s32.totalorder %s24, 0
  %p26 = pneg %p25
  %28 = shalt.err (%p26)

</llo_original>
